<compile_context>
chip_gen: v7x
topology: tpu7x:2x2x1
jax: 0.10.0
libtpu: 0.0.40
codegen_flags: <defaults>
</compile_context>

<pallas_src>
import jax
import jax.numpy as jnp
from jax import lax
from jax.experimental import pallas as pl
from jax.experimental.pallas import tpu as pltpu


def _round_up(x, m):
    return ((x + m - 1) // m) * m


def _has_bf16_valu():
    """True on chips with a bf16 VPU (v6e / v7x); False on v2-v5 (and on failure)."""
    try:
        kind = jax.devices()[0].device_kind.lower()
    except Exception:
        return False
    return not any(t in kind for t in ("v2", "v3", "v4", "v5"))


# ---------------------------------------------------------------------------
# Kernel
# ---------------------------------------------------------------------------
def value_net_kernel(x_ref, w1_ref, b1_ref, w2_ref, b2_ref, w3_ref, b3_ref, o_ref):
    """x_ref: [tile, D] (natural layout).  Weights are PyTorch-native [out, in].  Output [1, tile]."""
    l23_dtype = w2_ref.dtype          # matmul-input dtype for layers 2/3 (bf16 or f32)
    epi_dtype = b1_ref.dtype          # epilogue dtype (bf16 on v6e/v7x, f32 on v5e)

    x = x_ref[...].astype(w1_ref.dtype)   # layer-1 dtype (f32 by default; K = D is MXU-cheap)

    # Layer 1: contract over D -> [H1, tile] (batch on lanes).  Contraction dims (1, 1): the
    # implied transpose of the D-wide x block is an XLU op, hidden under the MXU.
    h1 = lax.dot_general(w1_ref[...], x, (((1,), (1,)), ((), ())),
                         preferred_element_type=jnp.float32)
    h1 = jnp.maximum(h1.astype(epi_dtype) + b1_ref[...], 0.0).astype(l23_dtype)

    # Layer 2: [H2, H1] @ [H1, tile] -> [H2, tile]     (MXU, f32 accumulation)
    h2 = jnp.dot(w2_ref[...], h1, preferred_element_type=jnp.float32)
    h2 = jnp.maximum(h2.astype(epi_dtype) + b2_ref[...], 0.0).astype(l23_dtype)

    # Head: [1, H2] @ [H2, tile] -> [1, tile]          (lane-dense output row)
    out = jnp.dot(w3_ref[...], h2, preferred_element_type=jnp.float32)
    o_ref[...] = (out + b3_ref[0, 0]).astype(o_ref.dtype)


# ---------------------------------------------------------------------------
# Parameter prep (one-time, parameter-load time)
# ---------------------------------------------------------------------------
def prepare_params(params, *, use_bf16=True, layer1_f32=True, bf16_epilogue=None):
    """Hoists all casts out of the per-call path.  Returns kernel-ready params."""
    w1, b1, w2, b2, w3, b3 = params
    if bf16_epilogue is None:
        bf16_epilogue = use_bf16 and _has_bf16_valu()
    cdtype = jnp.bfloat16 if use_bf16 else jnp.float32            # layers 2/3 matmul inputs
    l1dtype = jnp.float32 if layer1_f32 else cdtype               # layer-1 matmul inputs
    edtype = jnp.bfloat16 if (use_bf16 and bf16_epilogue) else jnp.float32
    H1, H2 = w1.shape[0], w2.shape[0]
    return (
        jnp.asarray(w1).astype(l1dtype),                          # [H1, D]
        jnp.asarray(b1).reshape(H1, 1).astype(edtype),            # [H1, 1]
        jnp.asarray(w2).astype(cdtype),                           # [H2, H1]
        jnp.asarray(b2).reshape(H2, 1).astype(edtype),            # [H2, 1]
        jnp.asarray(w3).astype(cdtype),                           # [1, H2]
        jnp.asarray(b3, jnp.float32).reshape(1, 1),               # SMEM scalar
    )


# ---------------------------------------------------------------------------
# Forward wrapper
# ---------------------------------------------------------------------------
def _choose_tile(B, batch_tile):
    """Lane tile: multiple of 128, targeting an even grid length >= 2 (v7x dual-TC balance)."""
    batch_tile = max(128, _round_up(batch_tile, 128))
    steps = max(2, pl.cdiv(B, batch_tile))
    if steps % 2:
        steps += 1
    return max(128, _round_up(pl.cdiv(B, steps), 128))


def value_network_forward(state, prepared_params, *, batch_tile=4096):
    """state: [B, state_dim] f32 -> [B] f32 (matches PyTorch forward incl. squeeze(-1))."""
    w1, b1, w2, b2, w3, b3 = prepared_params
    B, D = state.shape
    H1, H2 = w1.shape[0], w2.shape[0]
    assert w1.shape == (H1, D) and w2.shape == (H2, H1) and w3.shape == (1, H2)

    tile = _choose_tile(B, batch_tile)
    grid = (pl.cdiv(B, tile),)   # ragged tail handled by Pallas OOB masking; no full-array pad

    # Rough per-step VMEM footprint -> explicit scoped-VMEM limit (v5e default ~16 MiB,
    # v6e/v7x ~32 MiB; cap at 64 MiB = v7x physical VMEM).
    lane = lambda n: _round_up(n, 128)
    vmem_est = (tile * (2 * lane(D) * 4                 # double-buffered x (f32, lane-padded)
                        + (H1 + H2) * (4 + 2))          # h1/h2 f32 results + low-precision copies
                + 2 * lane(tile) * 8 * 4                # double-buffered (1, tile) output
                + 4 * 1024 * 1024)                      # weights/biases + compiler headroom
    vmem_limit = int(min(64 * 1024 * 1024, max(32 * 1024 * 1024, 2 * vmem_est)))

    wbytes = sum(int(a.size) * a.dtype.itemsize for a in (w1, b1, w2, b2, w3, b3))
    cost = pl.CostEstimate(
        flops=2 * B * (D * H1 + H1 * H2 + H2),
        transcendentals=0,
        bytes_accessed=B * D * state.dtype.itemsize + B * 4 + wbytes,
    )

    const = lambda i: (0, 0)   # resident blocks: fetched once, stay in VMEM across the grid

    out = pl.pallas_call(
        value_net_kernel,
        out_shape=jax.ShapeDtypeStruct((1, B), jnp.float32),
        grid_spec=pltpu.PrefetchScalarGridSpec(
            num_scalar_prefetch=0,
            grid=grid,
            in_specs=[
                pl.BlockSpec((tile, D), lambda i: (i, 0)),            # x tile, natural [B, D] layout
                pl.BlockSpec((H1, D), const),                         # w1 [H1, D]
                pl.BlockSpec((H1, 1), const),                         # b1 [H1, 1]
                pl.BlockSpec((H2, H1), const),                        # w2 [H2, H1]
                pl.BlockSpec((H2, 1), const),                         # b2 [H2, 1]
                pl.BlockSpec((1, H2), const),                         # w3 [1, H2]
                pl.BlockSpec(memory_space=pltpu.MemorySpace.SMEM),    # b3 scalar in SMEM
            ],
            out_specs=pl.BlockSpec((1, tile), lambda i: (0, i)),      # lane-dense output row
        ),
        compiler_params=pltpu.CompilerParams(
            dimension_semantics=("parallel",),        # shards grid steps across v7x's two TCs
            vmem_limit_bytes=vmem_limit,
        ),
        cost_estimate=cost,
    )(state, w1, b1, w2, b2, w3, b3)

    return out[0]   # [B], matches PyTorch .squeeze(-1)


# ---------------------------------------------------------------------------
# Init + references
# ---------------------------------------------------------------------------
def init_params(key, state_dim, hidden_sizes=(128, 128)):
    """nn.Linear-style init (U(-1/sqrt(fan_in), 1/sqrt(fan_in))) in PyTorch-native [out, in] layout."""
    dims = [state_dim] + list(hidden_sizes) + [1]
    params = []
    keys = jax.random.split(key, 2 * (len(dims) - 1))
    for li, (fan_in, fan_out) in enumerate(zip(dims[:-1], dims[1:])):
        bound = 1.0 / (fan_in ** 0.5)
        w = jax.random.uniform(keys[2 * li], (fan_out, fan_in), jnp.float32,
                               minval=-bound, maxval=bound)
        b = jax.random.uniform(keys[2 * li + 1], (fan_out, 1), jnp.float32,
                               minval=-bound, maxval=bound)
        params.extend([w, b])
    return tuple(params)


def value_network_ref(state, params):
    """Pure-JAX full-f32 reference (mirrors the PyTorch module)."""
    w1, b1, w2, b2, w3, b3 = params
    h1 = jnp.maximum(state @ w1.T + b1.reshape(-1), 0.0)
    h2 = jnp.maximum(h1 @ w2.T + b2.reshape(-1), 0.0)
    return (h2 @ w3.T + b3.reshape(-1))[:, 0]


def value_network_ref_matched(state, prepared):
    """Pure-JAX reference matching the kernel's precision choices (from prepared params' dtypes)."""
    w1, b1, w2, b2, w3, b3 = prepared
    x = state.astype(w1.dtype)
    h1 = lax.dot_general(w1, x, (((1,), (1,)), ((), ())), preferred_element_type=jnp.float32)
    h1 = jnp.maximum(h1.astype(b1.dtype) + b1, 0.0).astype(w2.dtype)
    h2 = jnp.dot(w2, h1, preferred_element_type=jnp.float32)
    h2 = jnp.maximum(h2.astype(b2.dtype) + b2, 0.0).astype(w3.dtype)
    out = jnp.dot(w3, h2, preferred_element_type=jnp.float32) + b3[0, 0]
    return out[0]


if __name__ == "__main__":
    key = jax.random.PRNGKey(0)
    k_state, k_params = jax.random.split(key)

    # Small shapes: batch=200 (not a multiple of 128 -> two grid steps with a ragged tail tile,
    # exercising OOB masking + pipelining), state_dim=32, hidden=(128, 128) as in the PyTorch
    # module defaults.
    batch, state_dim = 200, 32
    hidden_sizes = (128, 128)

    state = jax.random.normal(k_state, (batch, state_dim), jnp.float32)
    params = init_params(k_params, state_dim, hidden_sizes)
    prepared = prepare_params(params)          # one-time, parameter-load-time casts

    out = value_network_forward(state, prepared, batch_tile=4096)
    out = jax.block_until_ready(out)
    assert out.shape == (batch,), out.shape

    ref_matched = value_network_ref_matched(state, prepared)   # precision-matched reference
    ref_f32 = value_network_ref(state, params)                 # full-f32 reference
    assert jnp.allclose(out, ref_matched, atol=1e-2, rtol=1e-2), (out, ref_matched)
    assert jnp.allclose(out, ref_f32, atol=5e-2, rtol=5e-2), (out, ref_f32)

    print("KERNEL_OK")
</pallas_src>

<mosaic_0001>
module attributes {stable_mosaic.version = 11 : i64} {
  func.func @value_net_kernel(%arg0: i32, %arg1: memref<128x32xf32, #tpu.memory_space<vmem>>, %arg2: memref<128x32xf32, #tpu.memory_space<vmem>>, %arg3: memref<128x1xbf16, #tpu.memory_space<vmem>>, %arg4: memref<128x128xbf16, #tpu.memory_space<vmem>>, %arg5: memref<128x1xbf16, #tpu.memory_space<vmem>>, %arg6: memref<1x128xbf16, #tpu.memory_space<vmem>>, %arg7: memref<1x1xf32, #tpu.memory_space<smem>>, %arg8: memref<1x128xf32, #tpu.memory_space<vmem>>) attributes {dimension_semantics = [#tpu.dimension_semantics<parallel>], iteration_bounds = array<i64: 2>, scalar_prefetch = 0 : i64, scratch_operands = 0 : i64, tpu.core_type = #tpu.core_type<tc>, window_params = [{transform_indices = @transform_0, window_bounds = array<i64: 128, 32>}, {pipeline_mode = #tpu.pipeline_mode<synchronous>, transform_indices = @transform_1, window_bounds = array<i64: 128, 32>}, {pipeline_mode = #tpu.pipeline_mode<synchronous>, transform_indices = @transform_2, window_bounds = array<i64: 128, 1>}, {pipeline_mode = #tpu.pipeline_mode<synchronous>, transform_indices = @transform_3, window_bounds = array<i64: 128, 128>}, {pipeline_mode = #tpu.pipeline_mode<synchronous>, transform_indices = @transform_4, window_bounds = array<i64: 128, 1>}, {pipeline_mode = #tpu.pipeline_mode<synchronous>, transform_indices = @transform_5, window_bounds = array<i64: 1, 128>}, {transform_indices = @transform_6, window_bounds = array<i64: 1, 1>}, {transform_indices = @transform_7, window_bounds = array<i64: 1, 128>}]} {
    %c0 = arith.constant 0 : index
    %c0_0 = arith.constant 0 : index
    %0 = vector.load %arg1[%c0, %c0_0] : memref<128x32xf32, #tpu.memory_space<vmem>>, vector<128x32xf32>
    %c0_1 = arith.constant 0 : index
    %c0_2 = arith.constant 0 : index
    %1 = vector.load %arg2[%c0_1, %c0_2] : memref<128x32xf32, #tpu.memory_space<vmem>>, vector<128x32xf32>
    %cst = arith.constant dense<0.000000e+00> : vector<128x128xf32>
    %2 = tpu.matmul %1, %0, %cst {dimension_numbers = #tpu.dot_dimension_numbers<[1], [1], [0], [0], [0, 0, 1, 0], [], []>} : vector<128x32xf32>, vector<128x32xf32>, vector<128x128xf32> -> vector<128x128xf32>
    %3 = arith.truncf %2 : vector<128x128xf32> to vector<128x128xbf16>
    %c0_3 = arith.constant 0 : index
    %c0_4 = arith.constant 0 : index
    %4 = vector.load %arg3[%c0_3, %c0_4] : memref<128x1xbf16, #tpu.memory_space<vmem>>, vector<128x1xbf16>
    %5 = vector.broadcast %4 : vector<128x1xbf16> to vector<128x128xbf16>
    %6 = arith.addf %3, %5 : vector<128x128xbf16>
    %cst_5 = arith.constant 0.000000e+00 : bf16
    %7 = vector.broadcast %cst_5 : bf16 to vector<128x128xbf16>
    %8 = arith.maximumf %6, %7 : vector<128x128xbf16>
    %c0_6 = arith.constant 0 : index
    %c0_7 = arith.constant 0 : index
    %9 = vector.load %arg4[%c0_6, %c0_7] : memref<128x128xbf16, #tpu.memory_space<vmem>>, vector<128x128xbf16>
    %cst_8 = arith.constant dense<0.000000e+00> : vector<128x128xf32>
    %10 = tpu.matmul %9, %8, %cst_8 {dimension_numbers = #tpu.dot_dimension_numbers<[1], [0], [0], [1], [0, 0, 1, 1], [], []>} : vector<128x128xbf16>, vector<128x128xbf16>, vector<128x128xf32> -> vector<128x128xf32>
    %11 = arith.truncf %10 : vector<128x128xf32> to vector<128x128xbf16>
    %c0_9 = arith.constant 0 : index
    %c0_10 = arith.constant 0 : index
    %12 = vector.load %arg5[%c0_9, %c0_10] : memref<128x1xbf16, #tpu.memory_space<vmem>>, vector<128x1xbf16>
    %13 = vector.broadcast %12 : vector<128x1xbf16> to vector<128x128xbf16>
    %14 = arith.addf %11, %13 : vector<128x128xbf16>
    %cst_11 = arith.constant 0.000000e+00 : bf16
    %15 = vector.broadcast %cst_11 : bf16 to vector<128x128xbf16>
    %16 = arith.maximumf %14, %15 : vector<128x128xbf16>
    %c0_12 = arith.constant 0 : index
    %c0_13 = arith.constant 0 : index
    %17 = vector.load %arg6[%c0_12, %c0_13] : memref<1x128xbf16, #tpu.memory_space<vmem>>, vector<1x128xbf16>
    %cst_14 = arith.constant dense<0.000000e+00> : vector<1x128xf32>
    %18 = tpu.matmul %17, %16, %cst_14 {dimension_numbers = #tpu.dot_dimension_numbers<[1], [0], [0], [1], [0, 0, 1, 1], [], []>} : vector<1x128xbf16>, vector<128x128xbf16>, vector<1x128xf32> -> vector<1x128xf32>
    %c0_15 = arith.constant 0 : index
    %c0_16 = arith.constant 0 : index
    %19 = memref.load %arg7[%c0_15, %c0_16] : memref<1x1xf32, #tpu.memory_space<smem>>
    %20 = vector.broadcast %19 : f32 to vector<1x128xf32>
    %21 = arith.addf %18, %20 : vector<1x128xf32>
    %c0_17 = arith.constant 0 : index
    %c0_18 = arith.constant 0 : index
    %22 = vector.load %arg8[%c0_17, %c0_18] : memref<1x128xf32, #tpu.memory_space<vmem>>, vector<1x128xf32>
    tpu.vector_store %arg8[%c0_17, %c0_18], %21 {strides = array<i32>} : memref<1x128xf32, #tpu.memory_space<vmem>>, vector<1x128xf32>,
    return
  }
  func.func @transform_0(%arg0: i32) -> (i32, i32) {
    %c0_i32 = arith.constant 0 : i32
    %c0_i32_0 = arith.constant 0 : i32
    return %arg0, %c0_i32 : i32, i32
  }
  func.func @transform_1(%arg0: i32) -> (i32, i32) {
    %c0_i32 = arith.constant 0 : i32
    %c0_i32_0 = arith.constant 0 : i32
    %c0_i32_1 = arith.constant 0 : i32
    return %c0_i32, %c0_i32_0 : i32, i32
  }
  func.func @transform_2(%arg0: i32) -> (i32, i32) {
    %c0_i32 = arith.constant 0 : i32
    %c0_i32_0 = arith.constant 0 : i32
    %c0_i32_1 = arith.constant 0 : i32
    return %c0_i32, %c0_i32_0 : i32, i32
  }
  func.func @transform_3(%arg0: i32) -> (i32, i32) {
    %c0_i32 = arith.constant 0 : i32
    %c0_i32_0 = arith.constant 0 : i32
    %c0_i32_1 = arith.constant 0 : i32
    return %c0_i32, %c0_i32_0 : i32, i32
  }
  func.func @transform_4(%arg0: i32) -> (i32, i32) {
    %c0_i32 = arith.constant 0 : i32
    %c0_i32_0 = arith.constant 0 : i32
    %c0_i32_1 = arith.constant 0 : i32
    return %c0_i32, %c0_i32_0 : i32, i32
  }
  func.func @transform_5(%arg0: i32) -> (i32, i32) {
    %c0_i32 = arith.constant 0 : i32
    %c0_i32_0 = arith.constant 0 : i32
    %c0_i32_1 = arith.constant 0 : i32
    return %c0_i32, %c0_i32_0 : i32, i32
  }
  func.func @transform_6(%arg0: i32) -> (i32, i32) {
    %c0_i32 = arith.constant 0 : i32
    %c0_i32_0 = arith.constant 0 : i32
    %c0_i32_1 = arith.constant 0 : i32
    return %c0_i32, %c0_i32_0 : i32, i32
  }
  func.func @transform_7(%arg0: i32) -> (i32, i32) {
    %c0_i32 = arith.constant 0 : i32
    %c0_i32_0 = arith.constant 0 : i32
    return %c0_i32, %arg0 : i32, i32
  }
}

</mosaic_0001>

<llo_original>
// kernel: tpu_custom_call.1
$region0: #{tpu_custom_call.1}
  #allocation0 [shape = 'u32[]', space=smem, size = 0x4, offset = 0x4, fixed_abs, tag = 'smem constant byte address 0x4 - core index']
  #allocation1 [shape = 'u32[144,128]{1,0:T(1,128)}', space=vmem, size = 0x12000, scoped, tag = 'internal scratch']
  #allocation2 [shape = 'f32[1,1]{1,0:T(1,128)S(6)}', space=smem, size = 0x200, scoped, tag = 'scoped memory for tpu_custom_call.1']
  %s0 = inlined_call_operand.vmem [shape: f32[200,32], index: 0, kind: input, shape index: {}]
  %s1 = inlined_call_operand.vmem [shape: f32[128,32], index: 1, kind: input, shape index: {}]
  %s2 = inlined_call_operand.vmem [shape: bf16[128,1], index: 2, kind: input, shape index: {}]
  %s3 = inlined_call_operand.vmem [shape: bf16[128,128], index: 3, kind: input, shape index: {}]
  %s4 = inlined_call_operand.vmem [shape: bf16[128,1], index: 4, kind: input, shape index: {}]
  %s5 = inlined_call_operand.vmem [shape: bf16[1,128], index: 5, kind: input, shape index: {}]
  %s6 = inlined_call_operand.<no memory space> [shape: f32[1,1], index: 6, kind: input, shape index: {}]
  %s7 = inlined_call_operand.hbm [shape: f32[1,200], index: 7, kind: output, shape index: {}]
  %s8 = sld [smem:[#allocation0]]
  $region61: #{tpu_custom_call.1} parent=0
    _
  %s10 = ssub.s32 1, %s8
  %s11 = scalar_select 0, %s10, %s8
  %12 = sst [smem:[#allocation2]] %s6
  $region1: #{tpu_custom_call.1} parent=0
    #allocation3 [shape = 'u8[1024]{0}', space=vmem, size = 0x400, scoped, tag = 'output window, operand 0']
    #allocation4 [shape = 's32[2]{0}', space=sflag, size = 0x8, scoped, tag = 'scoped memory for tpu_custom_call.1']
    %13 = vsyncpa [#allocation4], 0
    %s14 = scalar_lea.sflag [#allocation4], 1
    %15 = vsyncpa %s14, 0
    loop: start=0, step=1, limit=4
    $region2: #{tpu_custom_call.1} parent=1 // loop_pre_header
      _
    $region3: #{tpu_custom_call.1} parent=1 // loop_header
      %s17 = sphi 0, %s21
      %p18 = scmp.ge.s32.totalorder %s17, 4
      %s27 = sphi 0, %s29
      %s30 = sphi 0, %s27
      %s31 = sphi 0, %s30
      %s47 = sphi 0, %s31
      %s51 = sphi 0, %s51
      %s53 = sphi 0, %s51
      %s54 = sphi 0, %s53
      %s68 = sphi 0, %s54
      %s72 = sphi 0, %s72
      %s74 = sphi 0, %s72
      %s75 = sphi 0, %s74
      %s89 = sphi 0, %s75
      %s93 = sphi 0, %s93
      %s95 = sphi 0, %s93
      %s96 = sphi 0, %s95
      %s110 = sphi 0, %s96
      %s114 = sphi 0, %s114
      %s116 = sphi 0, %s114
      %s117 = sphi 0, %s116
      %s131 = sphi 0, %s117
      %s135 = sphi 0, %s135
      %s137 = sphi 0, %s135
      %s138 = sphi 0, %s137
      %s152 = sphi 0, %s138
      %s156 = sphi 0, %s156
      %s158 = sphi 0, %s156
      %s159 = sphi 0, %s158
      %s173 = sphi 0, %s159
      %s179 = sphi 0, %s181
      %s182 = sphi 0, %s179
      %s183 = sphi 0, %s182
      %s199 = sphi 0, %s183
    $region4: #{tpu_custom_call.1} parent=1 // loop_header_branch
      %20 = sbr.rel (%p18) target = $region8
    $region5: #{tpu_custom_call.1} parent=1 // loop_body
      %s22 = ssub.s32 %s17, 1
      %s23 = ssub.s32 %s17, 2
      %s24 = sadd.s32 %s17, 1
      %s25 = ssub.s32 %s17, %s24
      %p26 = scmp.eq.s32.totalorder %s25, 0
      %s28 = sadd.s32 %s27, 1
      %s29 = scalar_select %p26, %s27, %s28
      %p32 = pneg %p26
      %p33 = scmp.eq.s32.totalorder %s17, 1
      %p34 = por %p32, %p33
      %p35 = scmp.ne.s32.totalorder %s27, %s30
      %p36 = scmp.eq.s32.totalorder %s17, 0
      %p37 = por %p35, %p36
      %p38 = scmp.ne.s32.totalorder %s27, %s30
      %p39 = scmp.eq.s32.totalorder %s22, 1
      %p40 = por %p38, %p39
      %p41 = scmp.ne.s32.totalorder %s30, %s31
      %p42 = scmp.eq.s32.totalorder %s22, 0
      %p43 = por %p41, %p42
      %p44 = scmp.ne.s32.totalorder %s30, %s31
      %p45 = scmp.eq.s32.totalorder %s23, 1
      %p46 = por %p44, %p45
      %p48 = scmp.ne.s32.totalorder %s31, %s47
      %p49 = scmp.eq.s32.totalorder %s23, 0
      %p50 = por %p48, %p49
      %s52 = sadd.s32 %s51, 1
      %p55 = scmp.eq.s32.totalorder %s17, 1
      %p56 = scmp.ne.s32.totalorder %s51, %s53
      %p57 = scmp.eq.s32.totalorder %s17, 0
      %p58 = por %p56, %p57
      %p59 = scmp.ne.s32.totalorder %s51, %s53
      %p60 = scmp.eq.s32.totalorder %s22, 1
      %p61 = por %p59, %p60
      %p62 = scmp.ne.s32.totalorder %s53, %s54
      %p63 = scmp.eq.s32.totalorder %s22, 0
      %p64 = por %p62, %p63
      %p65 = scmp.ne.s32.totalorder %s53, %s54
      %p66 = scmp.eq.s32.totalorder %s23, 1
      %p67 = por %p65, %p66
      %p69 = scmp.ne.s32.totalorder %s54, %s68
      %p70 = scmp.eq.s32.totalorder %s23, 0
      %p71 = por %p69, %p70
      %s73 = sadd.s32 %s72, 1
      %p76 = scmp.eq.s32.totalorder %s17, 1
      %p77 = scmp.ne.s32.totalorder %s72, %s74
      %p78 = scmp.eq.s32.totalorder %s17, 0
      %p79 = por %p77, %p78
      %p80 = scmp.ne.s32.totalorder %s72, %s74
      %p81 = scmp.eq.s32.totalorder %s22, 1
      %p82 = por %p80, %p81
      %p83 = scmp.ne.s32.totalorder %s74, %s75
      %p84 = scmp.eq.s32.totalorder %s22, 0
      %p85 = por %p83, %p84
      %p86 = scmp.ne.s32.totalorder %s74, %s75
      %p87 = scmp.eq.s32.totalorder %s23, 1
      %p88 = por %p86, %p87
      %p90 = scmp.ne.s32.totalorder %s75, %s89
      %p91 = scmp.eq.s32.totalorder %s23, 0
      %p92 = por %p90, %p91
      %s94 = sadd.s32 %s93, 1
      %p97 = scmp.eq.s32.totalorder %s17, 1
      %p98 = scmp.ne.s32.totalorder %s93, %s95
      %p99 = scmp.eq.s32.totalorder %s17, 0
      %p100 = por %p98, %p99
      %p101 = scmp.ne.s32.totalorder %s93, %s95
      %p102 = scmp.eq.s32.totalorder %s22, 1
      %p103 = por %p101, %p102
      %p104 = scmp.ne.s32.totalorder %s95, %s96
      %p105 = scmp.eq.s32.totalorder %s22, 0
      %p106 = por %p104, %p105
      %p107 = scmp.ne.s32.totalorder %s95, %s96
      %p108 = scmp.eq.s32.totalorder %s23, 1
      %p109 = por %p107, %p108
      %p111 = scmp.ne.s32.totalorder %s96, %s110
      %p112 = scmp.eq.s32.totalorder %s23, 0
      %p113 = por %p111, %p112
      %s115 = sadd.s32 %s114, 1
      %p118 = scmp.eq.s32.totalorder %s17, 1
      %p119 = scmp.ne.s32.totalorder %s114, %s116
      %p120 = scmp.eq.s32.totalorder %s17, 0
      %p121 = por %p119, %p120
      %p122 = scmp.ne.s32.totalorder %s114, %s116
      %p123 = scmp.eq.s32.totalorder %s22, 1
      %p124 = por %p122, %p123
      %p125 = scmp.ne.s32.totalorder %s116, %s117
      %p126 = scmp.eq.s32.totalorder %s22, 0
      %p127 = por %p125, %p126
      %p128 = scmp.ne.s32.totalorder %s116, %s117
      %p129 = scmp.eq.s32.totalorder %s23, 1
      %p130 = por %p128, %p129
      %p132 = scmp.ne.s32.totalorder %s117, %s131
      %p133 = scmp.eq.s32.totalorder %s23, 0
      %p134 = por %p132, %p133
      %s136 = sadd.s32 %s135, 1
      %p139 = scmp.eq.s32.totalorder %s17, 1
      %p140 = scmp.ne.s32.totalorder %s135, %s137
      %p141 = scmp.eq.s32.totalorder %s17, 0
      %p142 = por %p140, %p141
      %p143 = scmp.ne.s32.totalorder %s135, %s137
      %p144 = scmp.eq.s32.totalorder %s22, 1
      %p145 = por %p143, %p144
      %p146 = scmp.ne.s32.totalorder %s137, %s138
      %p147 = scmp.eq.s32.totalorder %s22, 0
      %p148 = por %p146, %p147
      %p149 = scmp.ne.s32.totalorder %s137, %s138
      %p150 = scmp.eq.s32.totalorder %s23, 1
      %p151 = por %p149, %p150
      %p153 = scmp.ne.s32.totalorder %s138, %s152
      %p154 = scmp.eq.s32.totalorder %s23, 0
      %p155 = por %p153, %p154
      %s157 = sadd.s32 %s156, 1
      %p160 = scmp.eq.s32.totalorder %s17, 1
      %p161 = scmp.ne.s32.totalorder %s156, %s158
      %p162 = scmp.eq.s32.totalorder %s17, 0
      %p163 = por %p161, %p162
      %p164 = scmp.ne.s32.totalorder %s156, %s158
      %p165 = scmp.eq.s32.totalorder %s22, 1
      %p166 = por %p164, %p165
      %p167 = scmp.ne.s32.totalorder %s158, %s159
      %p168 = scmp.eq.s32.totalorder %s22, 0
      %p169 = por %p167, %p168
      %p170 = scmp.ne.s32.totalorder %s158, %s159
      %p171 = scmp.eq.s32.totalorder %s23, 1
      %p172 = por %p170, %p171
      %p174 = scmp.ne.s32.totalorder %s159, %s173
      %p175 = scmp.eq.s32.totalorder %s23, 0
      %p176 = por %p174, %p175
      %s177 = ssub.s32 %s17, %s24
      %p178 = scmp.eq.s32.totalorder %s177, 0
      %s180 = sadd.s32 %s179, 1
      %s181 = scalar_select %p178, %s179, %s180
      %p184 = pneg %p178
      %p185 = scmp.eq.s32.totalorder %s17, 1
      %p186 = por %p184, %p185
      %p187 = scmp.ne.s32.totalorder %s179, %s182
      %p188 = scmp.eq.s32.totalorder %s17, 0
      %p189 = por %p187, %p188
      %p190 = scmp.ne.s32.totalorder %s179, %s182
      %p191 = scmp.eq.s32.totalorder %s22, 1
      %p192 = por %p190, %p191
      %p193 = scmp.ne.s32.totalorder %s182, %s183
      %p194 = scmp.eq.s32.totalorder %s22, 0
      %p195 = por %p193, %p194
      %p196 = scmp.ne.s32.totalorder %s182, %s183
      %p197 = scmp.eq.s32.totalorder %s23, 1
      %p198 = por %p196, %p197
      %p200 = scmp.ne.s32.totalorder %s183, %s199
      %p201 = scmp.eq.s32.totalorder %s23, 0
      %p202 = por %p200, %p201
      %p203 = scmp.le.s32.totalorder 1, %s17
      %p204 = scmp.lt.s32.totalorder %s17, 3
      %p205 = pnand %p203, %p204
      %p206 = pneg %p205
      // Predicated region
      $region9: #{tpu_custom_call.1} parent=5 // pred_check
        _
      $region10: #{tpu_custom_call.1} parent=5 // pred_check_branch
        %208 = sbr.rel (%p205) target = $region12
      $region11: #{tpu_custom_call.1} parent=5 // pred_region
        %s209 = ssub.s32 %s17, 1
        // Predicated region
        $region13: #{tpu_custom_call.1} parent=11 // pred_check
          %p210 = pneg %p64
        $region14: #{tpu_custom_call.1} parent=11 // pred_check_branch
          %212 = sbr.rel (%p210) target = $region16
        $region15: #{tpu_custom_call.1} parent=11 // pred_region
          _
        $region16: #{tpu_custom_call.1} parent=11 // pred_fallthru
          _
        // Predicated region
        $region17: #{tpu_custom_call.1} parent=11 // pred_check
          %p213 = pneg %p85
        $region18: #{tpu_custom_call.1} parent=11 // pred_check_branch
          %215 = sbr.rel (%p213) target = $region20
        $region19: #{tpu_custom_call.1} parent=11 // pred_region
          _
        $region20: #{tpu_custom_call.1} parent=11 // pred_fallthru
          _
        // Predicated region
        $region21: #{tpu_custom_call.1} parent=11 // pred_check
          %p216 = pneg %p106
        $region22: #{tpu_custom_call.1} parent=11 // pred_check_branch
          %218 = sbr.rel (%p216) target = $region24
        $region23: #{tpu_custom_call.1} parent=11 // pred_region
          _
        $region24: #{tpu_custom_call.1} parent=11 // pred_fallthru
          _
        // Predicated region
        $region25: #{tpu_custom_call.1} parent=11 // pred_check
          %p219 = pneg %p127
        $region26: #{tpu_custom_call.1} parent=11 // pred_check_branch
          %221 = sbr.rel (%p219) target = $region28
        $region27: #{tpu_custom_call.1} parent=11 // pred_region
          _
        $region28: #{tpu_custom_call.1} parent=11 // pred_fallthru
          _
        // Predicated region
        $region29: #{tpu_custom_call.1} parent=11 // pred_check
          %p222 = pneg %p148
        $region30: #{tpu_custom_call.1} parent=11 // pred_check_branch
          %224 = sbr.rel (%p222) target = $region32
        $region31: #{tpu_custom_call.1} parent=11 // pred_region
          _
        $region32: #{tpu_custom_call.1} parent=11 // pred_fallthru
          _
        // Predicated region
        $region33: #{tpu_custom_call.1} parent=11 // pred_check
          %p225 = pneg %p169
        $region34: #{tpu_custom_call.1} parent=11 // pred_check_branch
          %227 = sbr.rel (%p225) target = $region36
        $region35: #{tpu_custom_call.1} parent=11 // pred_region
          _
        $region36: #{tpu_custom_call.1} parent=11 // pred_fallthru
          _
      $region12: #{tpu_custom_call.1} parent=5 // pred_fallthru
        _
      %p228 = scmp.lt.s32.totalorder %s17, 2
      // Predicated region
      $region37: #{tpu_custom_call.1} parent=5 // pred_check
        %p229 = pneg %p228
      $region38: #{tpu_custom_call.1} parent=5 // pred_check_branch
        %231 = sbr.rel (%p229) target = $region40
      $region39: #{tpu_custom_call.1} parent=5 // pred_region
        // Predicated region
        $region41: #{tpu_custom_call.1} parent=39 // pred_check
          %p232 = pneg %p37
        $region42: #{tpu_custom_call.1} parent=39 // pred_check_branch
          %234 = sbr.rel (%p232) target = $region44
        $region43: #{tpu_custom_call.1} parent=39 // pred_region
          %s235 = smul.u32 16, %s17
          %s236 = ssub.s32 25, %s235
          %p237 = scmp.lt.s32.totalorder %s236, 16
          %s238 = scalar_select %p237, %s236, 16
          %s239 = smul.u32 128, %s238
          %p240 = scmp.lt.s32.totalorder %s235, 24
          %s241 = scalar_select %p240, %s235, 24
          %s242 = smul.addr %s241, 8
          %s243 = scalar_lea.vmem %s0, %s242
          %s244 = smul.u32 16, %s17
          %s245 = ssub.s32 25, %s244
          %p246 = scmp.lt.s32.totalorder %s245, 16
          %s247 = scalar_select %p246, %s245, 16
          %s248 = smul.u32 128, %s247
        $region44: #{tpu_custom_call.1} parent=39 // pred_fallthru
          _
      $region40: #{tpu_custom_call.1} parent=5 // pred_fallthru
        _
      %p249 = scmp.le.s32.totalorder 1, %s17
      %p250 = scmp.lt.s32.totalorder %s17, 3
      %p251 = pnand %p249, %p250
      %p252 = pneg %p251
      // Predicated region
      $region45: #{tpu_custom_call.1} parent=5 // pred_check
        _
      $region46: #{tpu_custom_call.1} parent=5 // pred_check_branch
        %254 = sbr.rel (%p251) target = $region48
      $region47: #{tpu_custom_call.1} parent=5 // pred_region
        %s255 = ssub.s32 %s17, 1
        %s256 = smul.u32 16, %s22
        %s257 = ssub.s32 25, %s256
        %p258 = scmp.lt.s32.totalorder %s257, 16
        %s259 = scalar_select %p258, %s257, 16
        %s260 = smul.u32 128, %s259
        %p261 = scmp.lt.s32.totalorder %s256, 24
        %s262 = scalar_select %p261, %s256, 24
        %s263 = smul.addr %s262, 8
        %s264 = scalar_lea.vmem %s0, %s263
        %p265 = pneg %p43
        %p266 = pneg %p40
        %p267 = pneg %p64
        %p268 = pneg %p61
        %p269 = pneg %p85
        %p270 = pneg %p82
        %p271 = pneg %p106
        %p272 = pneg %p103
        %p273 = pneg %p127
        %p274 = pneg %p124
        %p275 = pneg %p148
        %p276 = pneg %p145
        %p277 = pneg %p169
        %p278 = pneg %p166
        %p279 = pneg %p195
        %p280 = pneg %p192
        %s281 = sand.u32 %s182, 1
        %s282 = scalar_lea.sflag [#allocation4], %s281
        %s283 = sand.u32 %s182, 1
        %s284 = scalar_lea.vmem [#allocation3], %s283
        %s285 = smul.u32 16, %s22
        %s286 = ssub.s32 25, %s285
        %p287 = scmp.lt.s32.totalorder %s286, 16
        %s288 = scalar_select %p287, %s286, 16
        %s289 = smul.u32 128, %s288
        %p290 = scmp.lt.s32.totalorder %s285, 24
        %s291 = scalar_select %p290, %s285, 24
        %s292 = smul.addr %s291, 8
        %s293 = scalar_lea.vmem %s0, %s292
        %s294 = smul.u32 16, %s22
        %s295 = ssub.s32 25, %s294
        %p296 = scmp.lt.s32.totalorder %s295, 16
        %s297 = scalar_select %p296, %s295, 16
        %s298 = smul.u32 128, %s297
        %v300 = vld [vmem:[%s293] sm:$0xff]
        %v301 = vld [vmem:[%s293 + $0x8] sm:$0xff]
        %v302 = vld [vmem:[%s293 + $0x10] sm:$0xff]
        %v303 = vld [vmem:[%s293 + $0x18] sm:$0xff]
        %v304 = vld [vmem:[%s293 + $0x20] sm:$0xff]
        %v305 = vld [vmem:[%s293 + $0x28] sm:$0xff]
        %v306 = vld [vmem:[%s293 + $0x30] sm:$0xff]
        %v307 = vld [vmem:[%s293 + $0x38] sm:$0xff]
        %v308 = vld [vmem:[%s293 + $0x40] sm:$0xff]
        %v309 = vld [vmem:[%s293 + $0x48] sm:$0xff]
        %v310 = vld [vmem:[%s293 + $0x50] sm:$0xff]
        %v311 = vld [vmem:[%s293 + $0x58] sm:$0xff]
        %v312 = vld [vmem:[%s293 + $0x60] sm:$0xff]
        %v313 = vld [vmem:[%s293 + $0x68] sm:$0xff]
        %v314 = vld [vmem:[%s293 + $0x70] sm:$0xff]
        %v315 = vld [vmem:[%s293 + $0x78] sm:$0xff]
        %v316 = vld [vmem:[%s1] sm:$0xff]
        %v317 = vld [vmem:[%s1 + $0x8] sm:$0xff]
        %v318 = vld [vmem:[%s1 + $0x10] sm:$0xff]
        %v319 = vld [vmem:[%s1 + $0x18] sm:$0xff]
        %v320 = vld [vmem:[%s1 + $0x20] sm:$0xff]
        %v321 = vld [vmem:[%s1 + $0x28] sm:$0xff]
        %v322 = vld [vmem:[%s1 + $0x30] sm:$0xff]
        %v323 = vld [vmem:[%s1 + $0x38] sm:$0xff]
        %v324 = vld [vmem:[%s1 + $0x40] sm:$0xff]
        %v325 = vld [vmem:[%s1 + $0x48] sm:$0xff]
        %v326 = vld [vmem:[%s1 + $0x50] sm:$0xff]
        %v327 = vld [vmem:[%s1 + $0x58] sm:$0xff]
        %v328 = vld [vmem:[%s1 + $0x60] sm:$0xff]
        %v329 = vld [vmem:[%s1 + $0x68] sm:$0xff]
        %v330 = vld [vmem:[%s1 + $0x70] sm:$0xff]
        %v331 = vld [vmem:[%s1 + $0x78] sm:$0xff]
        %vm332 = vcmask 261120
        %v334 = vsel %vm332, %v316, 0
        %v337 = vsel %vm332, %v317, 0
        %v340 = vsel %vm332, %v318, 0
        %v343 = vsel %vm332, %v319, 0
        %v346 = vsel %vm332, %v320, 0
        %v349 = vsel %vm332, %v321, 0
        %v352 = vsel %vm332, %v322, 0
        %v355 = vsel %vm332, %v323, 0
        %v358 = vsel %vm332, %v324, 0
        %v361 = vsel %vm332, %v325, 0
        %v364 = vsel %vm332, %v326, 0
        %v367 = vsel %vm332, %v327, 0
        %v370 = vsel %vm332, %v328, 0
        %v373 = vsel %vm332, %v329, 0
        %v376 = vsel %vm332, %v330, 0
        %v379 = vsel %vm332, %v331, 0
        %v382 = vsel %vm332, %v300, 0
        %v385 = vsel %vm332, %v301, 0
        %v388 = vsel %vm332, %v302, 0
        %v391 = vsel %vm332, %v303, 0
        %v394 = vsel %vm332, %v304, 0
        %v397 = vsel %vm332, %v305, 0
        %v400 = vsel %vm332, %v306, 0
        %v403 = vsel %vm332, %v307, 0
        %v406 = vsel %vm332, %v308, 0
        %v409 = vsel %vm332, %v309, 0
        %v412 = vsel %vm332, %v310, 0
        %v415 = vsel %vm332, %v311, 0
        %v418 = vsel %vm332, %v312, 0
        %v421 = vsel %vm332, %v313, 0
        %v424 = vsel %vm332, %v314, 0
        %v427 = vsel %vm332, %v315, 0
        %429 = vmatprep.subr.mxu0 0.0
        %430 = vmatpush1.xpose.msra.mxu0 %v382
        %431 = vmatprep.subr.mxu0 0.0
        %432 = vmatpush1.xpose.msra.mxu0 %v385
        %433 = vmatprep.subr.mxu0 0.0
        %434 = vmatpush1.xpose.msra.mxu0 %v388
        %435 = vmatprep.subr.mxu0 0.0
        %436 = vmatpush1.xpose.msra.mxu0 %v391
        %437 = vmatprep.subr.mxu0 0.0
        %438 = vmatpush1.xpose.msra.mxu0 %v394
        %439 = vmatprep.subr.mxu0 0.0
        %440 = vmatpush1.xpose.msra.mxu0 %v397
        %441 = vmatprep.subr.mxu0 0.0
        %442 = vmatpush1.xpose.msra.mxu0 %v400
        %443 = vmatprep.subr.mxu0 0.0
        %444 = vmatpush1.xpose.msra.mxu0 %v403
        %445 = vmatprep.subr.mxu0 0.0
        %446 = vmatpush1.xpose.msra.mxu0 %v406
        %447 = vmatprep.subr.mxu0 0.0
        %448 = vmatpush1.xpose.msra.mxu0 %v409
        %449 = vmatprep.subr.mxu0 0.0
        %450 = vmatpush1.xpose.msra.mxu0 %v412
        %451 = vmatprep.subr.mxu0 0.0
        %452 = vmatpush1.xpose.msra.mxu0 %v415
        %453 = vmatprep.subr.mxu0 0.0
        %454 = vmatpush1.xpose.msra.mxu0 %v418
        %455 = vmatprep.subr.mxu0 0.0
        %456 = vmatpush1.xpose.msra.mxu0 %v421
        %457 = vmatprep.subr.mxu0 0.0
        %458 = vmatpush1.xpose.msra.mxu0 %v424
        %459 = vmatprep.subr.mxu0 0.0
        %460 = vmatpush1.xpose.msra.mxu0 %v427
        %461 = vmatprep.subr.mxu0 0.0
        %462 = vmatpush1.xpose.msra.mxu0 0.0
        %463 = vmatprep.subr.mxu0 0.0
        %464 = vmatpush1.xpose.msra.mxu0 0.0
        %465 = vmatprep.subr.mxu0 0.0
        %466 = vmatpush1.xpose.msra.mxu0 0.0
        %467 = vmatprep.subr.mxu0 0.0
        %468 = vmatpush1.xpose.msra.mxu0 0.0
        %469 = vmatprep.subr.mxu0 0.0
        %470 = vmatpush1.xpose.msra.mxu0 0.0
        %471 = vmatprep.subr.mxu0 0.0
        %472 = vmatpush1.xpose.msra.mxu0 0.0
        %473 = vmatprep.subr.mxu0 0.0
        %474 = vmatpush1.xpose.msra.mxu0 0.0
        %475 = vmatprep.subr.mxu0 0.0
        %476 = vmatpush1.xpose.msra.mxu0 0.0
        %477 = vmatprep.subr.mxu0 0.0
        %478 = vmatpush1.xpose.msra.mxu0 0.0
        %479 = vmatprep.subr.mxu0 0.0
        %480 = vmatpush1.xpose.msra.mxu0 0.0
        %481 = vmatprep.subr.mxu0 0.0
        %482 = vmatpush1.xpose.msra.mxu0 0.0
        %483 = vmatprep.subr.mxu0 0.0
        %484 = vmatpush1.xpose.msra.mxu0 0.0
        %485 = vmatprep.subr.mxu0 0.0
        %486 = vmatpush1.xpose.msra.mxu0 0.0
        %487 = vmatprep.subr.mxu0 0.0
        %488 = vmatpush1.xpose.msra.mxu0 0.0
        %489 = vmatprep.subr.mxu0 0.0
        %490 = vmatpush1.xpose.msra.mxu0 0.0
        %491 = vmatprep.subr.mxu0 0.0
        %492 = vmatpush1.xpose.msra.mxu0 0.0
        %493 = vmatprep.mubr.f32.mxu0 0.0
        %494 = vmatmul.mubr.f32.gmra.mrb[0].mxu0 %v334
        %v495 = vpop.f32.mrb[0].mxu0
        %v496 = vadd.f32 0.0, %v495
        %v497 = vpop.f32.mrb[0].mxu0
        %498 = vmatprep.mubr.f32.mxu0 0.0
        %499 = vmatmul.mubr.f32.gmra.mrb[0].mxu0 %v337
        %v500 = vpop.f32.mrb[0].mxu0
        %v501 = vadd.f32 0.0, %v500
        %v502 = vpop.f32.mrb[0].mxu0
        %503 = vmatprep.mubr.f32.mxu0 0.0
        %504 = vmatmul.mubr.f32.gmra.mrb[0].mxu0 %v340
        %v505 = vpop.f32.mrb[0].mxu0
        %v506 = vadd.f32 0.0, %v505
        %v507 = vpop.f32.mrb[0].mxu0
        %508 = vmatprep.mubr.f32.mxu0 0.0
        %509 = vmatmul.mubr.f32.gmra.mrb[0].mxu0 %v343
        %v510 = vpop.f32.mrb[0].mxu0
        %v511 = vadd.f32 0.0, %v510
        %v512 = vpop.f32.mrb[0].mxu0
        %513 = vmatprep.mubr.f32.mxu0 0.0
        %514 = vmatmul.mubr.f32.gmra.mrb[0].mxu0 %v346
        %v515 = vpop.f32.mrb[0].mxu0
        %v516 = vadd.f32 0.0, %v515
        %v517 = vpop.f32.mrb[0].mxu0
        %518 = vmatprep.mubr.f32.mxu0 0.0
        %519 = vmatmul.mubr.f32.gmra.mrb[0].mxu0 %v349
        %v520 = vpop.f32.mrb[0].mxu0
        %v521 = vadd.f32 0.0, %v520
        %v522 = vpop.f32.mrb[0].mxu0
        %523 = vmatprep.mubr.f32.mxu0 0.0
        %524 = vmatmul.mubr.f32.gmra.mrb[0].mxu0 %v352
        %v525 = vpop.f32.mrb[0].mxu0
        %v526 = vadd.f32 0.0, %v525
        %v527 = vpop.f32.mrb[0].mxu0
        %528 = vmatprep.mubr.f32.mxu0 0.0
        %529 = vmatmul.mubr.f32.gmra.mrb[0].mxu0 %v355
        %v530 = vpop.f32.mrb[0].mxu0
        %v531 = vadd.f32 0.0, %v530
        %v532 = vpop.f32.mrb[0].mxu0
        %533 = vmatprep.mubr.f32.mxu0 0.0
        %534 = vmatmul.mubr.f32.gmra.mrb[0].mxu0 %v358
        %v535 = vpop.f32.mrb[0].mxu0
        %v536 = vadd.f32 0.0, %v535
        %v537 = vpop.f32.mrb[0].mxu0
        %538 = vmatprep.mubr.f32.mxu0 0.0
        %539 = vmatmul.mubr.f32.gmra.mrb[0].mxu0 %v361
        %v540 = vpop.f32.mrb[0].mxu0
        %v541 = vadd.f32 0.0, %v540
        %v542 = vpop.f32.mrb[0].mxu0
        %543 = vmatprep.mubr.f32.mxu0 0.0
        %544 = vmatmul.mubr.f32.gmra.mrb[0].mxu0 %v364
        %v545 = vpop.f32.mrb[0].mxu0
        %v546 = vadd.f32 0.0, %v545
        %v547 = vpop.f32.mrb[0].mxu0
        %548 = vmatprep.mubr.f32.mxu0 0.0
        %549 = vmatmul.mubr.f32.gmra.mrb[0].mxu0 %v367
        %v550 = vpop.f32.mrb[0].mxu0
        %v551 = vadd.f32 0.0, %v550
        %v552 = vpop.f32.mrb[0].mxu0
        %553 = vmatprep.mubr.f32.mxu0 0.0
        %554 = vmatmul.mubr.f32.gmra.mrb[0].mxu0 %v370
        %v555 = vpop.f32.mrb[0].mxu0
        %v556 = vadd.f32 0.0, %v555
        %v557 = vpop.f32.mrb[0].mxu0
        %558 = vmatprep.mubr.f32.mxu0 0.0
        %559 = vmatmul.mubr.f32.gmra.mrb[0].mxu0 %v373
        %v560 = vpop.f32.mrb[0].mxu0
        %v561 = vadd.f32 0.0, %v560
        %v562 = vpop.f32.mrb[0].mxu0
        %563 = vmatprep.mubr.f32.mxu0 0.0
        %564 = vmatmul.mubr.f32.gmra.mrb[0].mxu0 %v376
        %v565 = vpop.f32.mrb[0].mxu0
        %v566 = vadd.f32 0.0, %v565
        %v567 = vpop.f32.mrb[0].mxu0
        %568 = vmatprep.mubr.f32.mxu0 0.0
        %569 = vmatmul.mubr.f32.gmra.mrb[0].mxu0 %v379
        %v570 = vpop.f32.mrb[0].mxu0
        %v571 = vadd.f32 0.0, %v570
        %v572 = vpop.f32.mrb[0].mxu0
        %573 = vdwg.mxu0
        %v574 = vpack.c.bf16 %v501, %v496
        %v575 = vpack.c.bf16 %v511, %v506
        %v576 = vpack.c.bf16 %v521, %v516
        %v577 = vpack.c.bf16 %v531, %v526
        %v578 = vpack.c.bf16 %v541, %v536
        %v579 = vpack.c.bf16 %v551, %v546
        %v580 = vpack.c.bf16 %v561, %v556
        %v581 = vpack.c.bf16 %v571, %v566
        %v582 = vld [vmem:[%s2] sm:$0xf]
        %v583 = vld [vmem:[%s2 + $0x4] sm:$0xf]
        %v584 = vld [vmem:[%s2 + $0x8] sm:$0xf]
        %v585 = vld [vmem:[%s2 + $0xc] sm:$0xf]
        %v586 = vld [vmem:[%s2 + $0x10] sm:$0xf]
        %v587 = vld [vmem:[%s2 + $0x14] sm:$0xf]
        %v588 = vld [vmem:[%s2 + $0x18] sm:$0xf]
        %v589 = vld [vmem:[%s2 + $0x1c] sm:$0xf]
        %v590 = vld [vmem:[%s2 + $0x20] sm:$0xf]
        %v591 = vld [vmem:[%s2 + $0x24] sm:$0xf]
        %v592 = vld [vmem:[%s2 + $0x28] sm:$0xf]
        %v593 = vld [vmem:[%s2 + $0x2c] sm:$0xf]
        %v594 = vld [vmem:[%s2 + $0x30] sm:$0xf]
        %v595 = vld [vmem:[%s2 + $0x34] sm:$0xf]
        %v596 = vld [vmem:[%s2 + $0x38] sm:$0xf]
        %v597 = vld [vmem:[%s2 + $0x3c] sm:$0xf]
        %599 = vset.pattern.permute.xlu0 0
        %600 = vperm.xlu0 %599, %v582
        %v601 = vpop.permute.xlu0 %600
        %v604 = vunpack.c.l.s4 839922192
        %v605 = vunpack.c.0.s8 %v604
        %v606 = vlaneseq
        %v607 = vshrl.u32 %v606, 7
        %v608 = vsub.s32 %v605, %v607
        %v609 = vrot.slane %v601, %v608
        %611 = vset.pattern.permute.xlu0 0
        %612 = vperm.xlu0 %611, %v583
        %v613 = vpop.permute.xlu0 %612
        %v616 = vunpack.c.l.s4 839922192
        %v617 = vunpack.c.0.s8 %v616
        %v618 = vlaneseq
        %v619 = vshrl.u32 %v618, 7
        %v620 = vsub.s32 %v617, %v619
        %v621 = vrot.slane %v613, %v620
        %623 = vset.pattern.permute.xlu0 0
        %624 = vperm.xlu0 %623, %v584
        %v625 = vpop.permute.xlu0 %624
        %v628 = vunpack.c.l.s4 839922192
        %v629 = vunpack.c.0.s8 %v628
        %v630 = vlaneseq
        %v631 = vshrl.u32 %v630, 7
        %v632 = vsub.s32 %v629, %v631
        %v633 = vrot.slane %v625, %v632
        %635 = vset.pattern.permute.xlu0 0
        %636 = vperm.xlu0 %635, %v585
        %v637 = vpop.permute.xlu0 %636
        %v640 = vunpack.c.l.s4 839922192
        %v641 = vunpack.c.0.s8 %v640
        %v642 = vlaneseq
        %v643 = vshrl.u32 %v642, 7
        %v644 = vsub.s32 %v641, %v643
        %v645 = vrot.slane %v637, %v644
        %647 = vset.pattern.permute.xlu0 0
        %648 = vperm.xlu0 %647, %v586
        %v649 = vpop.permute.xlu0 %648
        %v652 = vunpack.c.l.s4 839922192
        %v653 = vunpack.c.0.s8 %v652
        %v654 = vlaneseq
        %v655 = vshrl.u32 %v654, 7
        %v656 = vsub.s32 %v653, %v655
        %v657 = vrot.slane %v649, %v656
        %659 = vset.pattern.permute.xlu0 0
        %660 = vperm.xlu0 %659, %v587
        %v661 = vpop.permute.xlu0 %660
        %v664 = vunpack.c.l.s4 839922192
        %v665 = vunpack.c.0.s8 %v664
        %v666 = vlaneseq
        %v667 = vshrl.u32 %v666, 7
        %v668 = vsub.s32 %v665, %v667
        %v669 = vrot.slane %v661, %v668
        %671 = vset.pattern.permute.xlu0 0
        %672 = vperm.xlu0 %671, %v588
        %v673 = vpop.permute.xlu0 %672
        %v676 = vunpack.c.l.s4 839922192
        %v677 = vunpack.c.0.s8 %v676
        %v678 = vlaneseq
        %v679 = vshrl.u32 %v678, 7
        %v680 = vsub.s32 %v677, %v679
        %v681 = vrot.slane %v673, %v680
        %683 = vset.pattern.permute.xlu0 0
        %684 = vperm.xlu0 %683, %v589
        %v685 = vpop.permute.xlu0 %684
        %v688 = vunpack.c.l.s4 839922192
        %v689 = vunpack.c.0.s8 %v688
        %v690 = vlaneseq
        %v691 = vshrl.u32 %v690, 7
        %v692 = vsub.s32 %v689, %v691
        %v693 = vrot.slane %v685, %v692
        %695 = vset.pattern.permute.xlu0 0
        %696 = vperm.xlu0 %695, %v590
        %v697 = vpop.permute.xlu0 %696
        %v700 = vunpack.c.l.s4 839922192
        %v701 = vunpack.c.0.s8 %v700
        %v702 = vlaneseq
        %v703 = vshrl.u32 %v702, 7
        %v704 = vsub.s32 %v701, %v703
        %v705 = vrot.slane %v697, %v704
        %707 = vset.pattern.permute.xlu0 0
        %708 = vperm.xlu0 %707, %v591
        %v709 = vpop.permute.xlu0 %708
        %v712 = vunpack.c.l.s4 839922192
        %v713 = vunpack.c.0.s8 %v712
        %v714 = vlaneseq
        %v715 = vshrl.u32 %v714, 7
        %v716 = vsub.s32 %v713, %v715
        %v717 = vrot.slane %v709, %v716
        %719 = vset.pattern.permute.xlu0 0
        %720 = vperm.xlu0 %719, %v592
        %v721 = vpop.permute.xlu0 %720
        %v724 = vunpack.c.l.s4 839922192
        %v725 = vunpack.c.0.s8 %v724
        %v726 = vlaneseq
        %v727 = vshrl.u32 %v726, 7
        %v728 = vsub.s32 %v725, %v727
        %v729 = vrot.slane %v721, %v728
        %731 = vset.pattern.permute.xlu0 0
        %732 = vperm.xlu0 %731, %v593
        %v733 = vpop.permute.xlu0 %732
        %v736 = vunpack.c.l.s4 839922192
        %v737 = vunpack.c.0.s8 %v736
        %v738 = vlaneseq
        %v739 = vshrl.u32 %v738, 7
        %v740 = vsub.s32 %v737, %v739
        %v741 = vrot.slane %v733, %v740
        %743 = vset.pattern.permute.xlu0 0
        %744 = vperm.xlu0 %743, %v594
        %v745 = vpop.permute.xlu0 %744
        %v748 = vunpack.c.l.s4 839922192
        %v749 = vunpack.c.0.s8 %v748
        %v750 = vlaneseq
        %v751 = vshrl.u32 %v750, 7
        %v752 = vsub.s32 %v749, %v751
        %v753 = vrot.slane %v745, %v752
        %755 = vset.pattern.permute.xlu0 0
        %756 = vperm.xlu0 %755, %v595
        %v757 = vpop.permute.xlu0 %756
        %v760 = vunpack.c.l.s4 839922192
        %v761 = vunpack.c.0.s8 %v760
        %v762 = vlaneseq
        %v763 = vshrl.u32 %v762, 7
        %v764 = vsub.s32 %v761, %v763
        %v765 = vrot.slane %v757, %v764
        %767 = vset.pattern.permute.xlu0 0
        %768 = vperm.xlu0 %767, %v596
        %v769 = vpop.permute.xlu0 %768
        %v772 = vunpack.c.l.s4 839922192
        %v773 = vunpack.c.0.s8 %v772
        %v774 = vlaneseq
        %v775 = vshrl.u32 %v774, 7
        %v776 = vsub.s32 %v773, %v775
        %v777 = vrot.slane %v769, %v776
        %779 = vset.pattern.permute.xlu0 0
        %780 = vperm.xlu0 %779, %v597
        %v781 = vpop.permute.xlu0 %780
        %v784 = vunpack.c.l.s4 839922192
        %v785 = vunpack.c.0.s8 %v784
        %v786 = vlaneseq
        %v787 = vshrl.u32 %v786, 7
        %v788 = vsub.s32 %v785, %v787
        %v789 = vrot.slane %v781, %v788
        %v806 = vunpack.c.l.b16 %v609
        %v807 = vunpack.c.l.b16 %v621
        %v808 = vunpack.c.l.b16 %v633
        %v809 = vunpack.c.l.b16 %v645
        %v810 = vunpack.c.l.b16 %v657
        %v811 = vunpack.c.l.b16 %v669
        %v812 = vunpack.c.l.b16 %v681
        %v813 = vunpack.c.l.b16 %v693
        %v814 = vunpack.c.l.b16 %v705
        %v815 = vunpack.c.l.b16 %v717
        %v816 = vunpack.c.l.b16 %v729
        %v817 = vunpack.c.l.b16 %v741
        %v818 = vunpack.c.l.b16 %v753
        %v819 = vunpack.c.l.b16 %v765
        %v820 = vunpack.c.l.b16 %v777
        %v821 = vunpack.c.l.b16 %v789
        %v822 = vpack.c.b16 %v807, %v806
        %v823 = vpack.c.b16 %v809, %v808
        %v824 = vpack.c.b16 %v811, %v810
        %v825 = vpack.c.b16 %v813, %v812
        %v826 = vpack.c.b16 %v815, %v814
        %v827 = vpack.c.b16 %v817, %v816
        %v828 = vpack.c.b16 %v819, %v818
        %v829 = vpack.c.b16 %v821, %v820
        %v838 = vadd.bf16 %v574, %v822
        %v839 = vadd.bf16 %v575, %v823
        %v840 = vadd.bf16 %v576, %v824
        %v841 = vadd.bf16 %v577, %v825
        %v842 = vadd.bf16 %v578, %v826
        %v843 = vadd.bf16 %v579, %v827
        %v844 = vadd.bf16 %v580, %v828
        %v845 = vadd.bf16 %v581, %v829
        %v846 = vmax.bf16 %v838, 0
        %v847 = vmax.bf16 %v839, 0
        %v848 = vmax.bf16 %v840, 0
        %v849 = vmax.bf16 %v841, 0
        %v850 = vmax.bf16 %v842, 0
        %v851 = vmax.bf16 %v843, 0
        %v852 = vmax.bf16 %v844, 0
        %v853 = vmax.bf16 %v845, 0
        %v854 = vld [vmem:[%s3] sm:$0xf]
        %v855 = vld [vmem:[%s3 + $0x4] sm:$0xf]
        %v856 = vld [vmem:[%s3 + $0x8] sm:$0xf]
        %v857 = vld [vmem:[%s3 + $0xc] sm:$0xf]
        %v858 = vld [vmem:[%s3 + $0x10] sm:$0xf]
        %v859 = vld [vmem:[%s3 + $0x14] sm:$0xf]
        %v860 = vld [vmem:[%s3 + $0x18] sm:$0xf]
        %v861 = vld [vmem:[%s3 + $0x1c] sm:$0xf]
        %v862 = vld [vmem:[%s3 + $0x20] sm:$0xf]
        %v863 = vld [vmem:[%s3 + $0x24] sm:$0xf]
        %v864 = vld [vmem:[%s3 + $0x28] sm:$0xf]
        %v865 = vld [vmem:[%s3 + $0x2c] sm:$0xf]
        %v866 = vld [vmem:[%s3 + $0x30] sm:$0xf]
        %v867 = vld [vmem:[%s3 + $0x34] sm:$0xf]
        %v868 = vld [vmem:[%s3 + $0x38] sm:$0xf]
        %v869 = vld [vmem:[%s3 + $0x3c] sm:$0xf]
        %v886 = vunpack.c.l.b16 %v854
        %v887 = vunpack.c.l.b16 %v855
        %v888 = vunpack.c.l.b16 %v856
        %v889 = vunpack.c.l.b16 %v857
        %v890 = vunpack.c.l.b16 %v858
        %v891 = vunpack.c.l.b16 %v859
        %v892 = vunpack.c.l.b16 %v860
        %v893 = vunpack.c.l.b16 %v861
        %v894 = vunpack.c.l.b16 %v862
        %v895 = vunpack.c.l.b16 %v863
        %v896 = vunpack.c.l.b16 %v864
        %v897 = vunpack.c.l.b16 %v865
        %v898 = vunpack.c.l.b16 %v866
        %v899 = vunpack.c.l.b16 %v867
        %v900 = vunpack.c.l.b16 %v868
        %v901 = vunpack.c.l.b16 %v869
        %v902 = vpack.c.b16 %v887, %v886
        %v903 = vpack.c.b16 %v889, %v888
        %v904 = vpack.c.b16 %v891, %v890
        %v905 = vpack.c.b16 %v893, %v892
        %v906 = vpack.c.b16 %v895, %v894
        %v907 = vpack.c.b16 %v897, %v896
        %v908 = vpack.c.b16 %v899, %v898
        %v909 = vpack.c.b16 %v901, %v900
        %918 = vmatprep.subr.bf16.mxu0 0
        %919 = vmatpush1.bf16.msra.mxu0 %v846
        %920 = vmatprep.subr.bf16.mxu0 0
        %921 = vmatpush1.bf16.msra.mxu0 %v847
        %922 = vmatprep.subr.bf16.mxu0 0
        %923 = vmatpush1.bf16.msra.mxu0 %v848
        %924 = vmatprep.subr.bf16.mxu0 0
        %925 = vmatpush1.bf16.msra.mxu0 %v849
        %926 = vmatprep.subr.bf16.mxu0 0
        %927 = vmatpush1.bf16.msra.mxu0 %v850
        %928 = vmatprep.subr.bf16.mxu0 0
        %929 = vmatpush1.bf16.msra.mxu0 %v851
        %930 = vmatprep.subr.bf16.mxu0 0
        %931 = vmatpush1.bf16.msra.mxu0 %v852
        %932 = vmatprep.subr.bf16.mxu0 0
        %933 = vmatpush1.bf16.msra.mxu0 %v853
        %934 = vmatprep.subr.bf16.mxu0 0
        %935 = vmatpush1.bf16.msra.mxu0 0
        %936 = vmatprep.subr.bf16.mxu0 0
        %937 = vmatpush1.bf16.msra.mxu0 0
        %938 = vmatprep.subr.bf16.mxu0 0
        %939 = vmatpush1.bf16.msra.mxu0 0
        %940 = vmatprep.subr.bf16.mxu0 0
        %941 = vmatpush1.bf16.msra.mxu0 0
        %942 = vmatprep.subr.bf16.mxu0 0
        %943 = vmatpush1.bf16.msra.mxu0 0
        %944 = vmatprep.subr.bf16.mxu0 0
        %945 = vmatpush1.bf16.msra.mxu0 0
        %946 = vmatprep.subr.bf16.mxu0 0
        %947 = vmatpush1.bf16.msra.mxu0 0
        %948 = vmatprep.subr.bf16.mxu0 0
        %949 = vmatpush1.bf16.msra.mxu0 0
        %950 = vmatprep.mubr.bf16.mxu0 0
        %951 = vmatmul.mubr.bf16.gmra.mrb[0].mxu0 %v902
        %v952 = vpop.f32.mrb[0].mxu0
        %v953 = vadd.f32 0.0, %v952
        %v954 = vpop.f32.mrb[0].mxu0
        %v955 = vpop.f32.mrb[0].mxu0
        %v956 = vadd.f32 0.0, %v955
        %v957 = vpop.f32.mrb[0].mxu0
        %958 = vmatprep.mubr.bf16.mxu0 0
        %959 = vmatmul.mubr.bf16.gmra.mrb[0].mxu0 %v903
        %v960 = vpop.f32.mrb[0].mxu0
        %v961 = vadd.f32 0.0, %v960
        %v962 = vpop.f32.mrb[0].mxu0
        %v963 = vpop.f32.mrb[0].mxu0
        %v964 = vadd.f32 0.0, %v963
        %v965 = vpop.f32.mrb[0].mxu0
        %966 = vmatprep.mubr.bf16.mxu0 0
        %967 = vmatmul.mubr.bf16.gmra.mrb[0].mxu0 %v904
        %v968 = vpop.f32.mrb[0].mxu0
        %v969 = vadd.f32 0.0, %v968
        %v970 = vpop.f32.mrb[0].mxu0
        %v971 = vpop.f32.mrb[0].mxu0
        %v972 = vadd.f32 0.0, %v971
        %v973 = vpop.f32.mrb[0].mxu0
        %974 = vmatprep.mubr.bf16.mxu0 0
        %975 = vmatmul.mubr.bf16.gmra.mrb[0].mxu0 %v905
        %v976 = vpop.f32.mrb[0].mxu0
        %v977 = vadd.f32 0.0, %v976
        %v978 = vpop.f32.mrb[0].mxu0
        %v979 = vpop.f32.mrb[0].mxu0
        %v980 = vadd.f32 0.0, %v979
        %v981 = vpop.f32.mrb[0].mxu0
        %982 = vmatprep.mubr.bf16.mxu0 0
        %983 = vmatmul.mubr.bf16.gmra.mrb[0].mxu0 %v906
        %v984 = vpop.f32.mrb[0].mxu0
        %v985 = vadd.f32 0.0, %v984
        %v986 = vpop.f32.mrb[0].mxu0
        %v987 = vpop.f32.mrb[0].mxu0
        %v988 = vadd.f32 0.0, %v987
        %v989 = vpop.f32.mrb[0].mxu0
        %990 = vmatprep.mubr.bf16.mxu0 0
        %991 = vmatmul.mubr.bf16.gmra.mrb[0].mxu0 %v907
        %v992 = vpop.f32.mrb[0].mxu0
        %v993 = vadd.f32 0.0, %v992
        %v994 = vpop.f32.mrb[0].mxu0
        %v995 = vpop.f32.mrb[0].mxu0
        %v996 = vadd.f32 0.0, %v995
        %v997 = vpop.f32.mrb[0].mxu0
        %998 = vmatprep.mubr.bf16.mxu0 0
        %999 = vmatmul.mubr.bf16.gmra.mrb[0].mxu0 %v908
        %v1000 = vpop.f32.mrb[0].mxu0
        %v1001 = vadd.f32 0.0, %v1000
        %v1002 = vpop.f32.mrb[0].mxu0
        %v1003 = vpop.f32.mrb[0].mxu0
        %v1004 = vadd.f32 0.0, %v1003
        %v1005 = vpop.f32.mrb[0].mxu0
        %1006 = vmatprep.mubr.bf16.mxu0 0
        %1007 = vmatmul.mubr.bf16.gmra.mrb[0].mxu0 %v909
        %v1008 = vpop.f32.mrb[0].mxu0
        %v1009 = vadd.f32 0.0, %v1008
        %v1010 = vpop.f32.mrb[0].mxu0
        %v1011 = vpop.f32.mrb[0].mxu0
        %v1012 = vadd.f32 0.0, %v1011
        %v1013 = vpop.f32.mrb[0].mxu0
        %1014 = vdwg.mxu0
        %v1015 = vpack.c.bf16 %v956, %v953
        %v1016 = vpack.c.bf16 %v964, %v961
        %v1017 = vpack.c.bf16 %v972, %v969
        %v1018 = vpack.c.bf16 %v980, %v977
        %v1019 = vpack.c.bf16 %v988, %v985
        %v1020 = vpack.c.bf16 %v996, %v993
        %v1021 = vpack.c.bf16 %v1004, %v1001
        %v1022 = vpack.c.bf16 %v1012, %v1009
        %v1023 = vld [vmem:[%s4] sm:$0xf]
        %v1024 = vld [vmem:[%s4 + $0x4] sm:$0xf]
        %v1025 = vld [vmem:[%s4 + $0x8] sm:$0xf]
        %v1026 = vld [vmem:[%s4 + $0xc] sm:$0xf]
        %v1027 = vld [vmem:[%s4 + $0x10] sm:$0xf]
        %v1028 = vld [vmem:[%s4 + $0x14] sm:$0xf]
        %v1029 = vld [vmem:[%s4 + $0x18] sm:$0xf]
        %v1030 = vld [vmem:[%s4 + $0x1c] sm:$0xf]
        %v1031 = vld [vmem:[%s4 + $0x20] sm:$0xf]
        %v1032 = vld [vmem:[%s4 + $0x24] sm:$0xf]
        %v1033 = vld [vmem:[%s4 + $0x28] sm:$0xf]
        %v1034 = vld [vmem:[%s4 + $0x2c] sm:$0xf]
        %v1035 = vld [vmem:[%s4 + $0x30] sm:$0xf]
        %v1036 = vld [vmem:[%s4 + $0x34] sm:$0xf]
        %v1037 = vld [vmem:[%s4 + $0x38] sm:$0xf]
        %v1038 = vld [vmem:[%s4 + $0x3c] sm:$0xf]
        %1040 = vset.pattern.permute.xlu0 0
        %1041 = vperm.xlu0 %1040, %v1023
        %v1042 = vpop.permute.xlu0 %1041
        %v1045 = vunpack.c.l.s4 839922192
        %v1046 = vunpack.c.0.s8 %v1045
        %v1047 = vlaneseq
        %v1048 = vshrl.u32 %v1047, 7
        %v1049 = vsub.s32 %v1046, %v1048
        %v1050 = vrot.slane %v1042, %v1049
        %1052 = vset.pattern.permute.xlu0 0
        %1053 = vperm.xlu0 %1052, %v1024
        %v1054 = vpop.permute.xlu0 %1053
        %v1057 = vunpack.c.l.s4 839922192
        %v1058 = vunpack.c.0.s8 %v1057
        %v1059 = vlaneseq
        %v1060 = vshrl.u32 %v1059, 7
        %v1061 = vsub.s32 %v1058, %v1060
        %v1062 = vrot.slane %v1054, %v1061
        %1064 = vset.pattern.permute.xlu0 0
        %1065 = vperm.xlu0 %1064, %v1025
        %v1066 = vpop.permute.xlu0 %1065
        %v1069 = vunpack.c.l.s4 839922192
        %v1070 = vunpack.c.0.s8 %v1069
        %v1071 = vlaneseq
        %v1072 = vshrl.u32 %v1071, 7
        %v1073 = vsub.s32 %v1070, %v1072
        %v1074 = vrot.slane %v1066, %v1073
        %1076 = vset.pattern.permute.xlu0 0
        %1077 = vperm.xlu0 %1076, %v1026
        %v1078 = vpop.permute.xlu0 %1077
        %v1081 = vunpack.c.l.s4 839922192
        %v1082 = vunpack.c.0.s8 %v1081
        %v1083 = vlaneseq
        %v1084 = vshrl.u32 %v1083, 7
        %v1085 = vsub.s32 %v1082, %v1084
        %v1086 = vrot.slane %v1078, %v1085
        %1088 = vset.pattern.permute.xlu0 0
        %1089 = vperm.xlu0 %1088, %v1027
        %v1090 = vpop.permute.xlu0 %1089
        %v1093 = vunpack.c.l.s4 839922192
        %v1094 = vunpack.c.0.s8 %v1093
        %v1095 = vlaneseq
        %v1096 = vshrl.u32 %v1095, 7
        %v1097 = vsub.s32 %v1094, %v1096
        %v1098 = vrot.slane %v1090, %v1097
        %1100 = vset.pattern.permute.xlu0 0
        %1101 = vperm.xlu0 %1100, %v1028
        %v1102 = vpop.permute.xlu0 %1101
        %v1105 = vunpack.c.l.s4 839922192
        %v1106 = vunpack.c.0.s8 %v1105
        %v1107 = vlaneseq
        %v1108 = vshrl.u32 %v1107, 7
        %v1109 = vsub.s32 %v1106, %v1108
        %v1110 = vrot.slane %v1102, %v1109
        %1112 = vset.pattern.permute.xlu0 0
        %1113 = vperm.xlu0 %1112, %v1029
        %v1114 = vpop.permute.xlu0 %1113
        %v1117 = vunpack.c.l.s4 839922192
        %v1118 = vunpack.c.0.s8 %v1117
        %v1119 = vlaneseq
        %v1120 = vshrl.u32 %v1119, 7
        %v1121 = vsub.s32 %v1118, %v1120
        %v1122 = vrot.slane %v1114, %v1121
        %1124 = vset.pattern.permute.xlu0 0
        %1125 = vperm.xlu0 %1124, %v1030
        %v1126 = vpop.permute.xlu0 %1125
        %v1129 = vunpack.c.l.s4 839922192
        %v1130 = vunpack.c.0.s8 %v1129
        %v1131 = vlaneseq
        %v1132 = vshrl.u32 %v1131, 7
        %v1133 = vsub.s32 %v1130, %v1132
        %v1134 = vrot.slane %v1126, %v1133
        %1136 = vset.pattern.permute.xlu0 0
        %1137 = vperm.xlu0 %1136, %v1031
        %v1138 = vpop.permute.xlu0 %1137
        %v1141 = vunpack.c.l.s4 839922192
        %v1142 = vunpack.c.0.s8 %v1141
        %v1143 = vlaneseq
        %v1144 = vshrl.u32 %v1143, 7
        %v1145 = vsub.s32 %v1142, %v1144
        %v1146 = vrot.slane %v1138, %v1145
        %1148 = vset.pattern.permute.xlu0 0
        %1149 = vperm.xlu0 %1148, %v1032
        %v1150 = vpop.permute.xlu0 %1149
        %v1153 = vunpack.c.l.s4 839922192
        %v1154 = vunpack.c.0.s8 %v1153
        %v1155 = vlaneseq
        %v1156 = vshrl.u32 %v1155, 7
        %v1157 = vsub.s32 %v1154, %v1156
        %v1158 = vrot.slane %v1150, %v1157
        %1160 = vset.pattern.permute.xlu0 0
        %1161 = vperm.xlu0 %1160, %v1033
        %v1162 = vpop.permute.xlu0 %1161
        %v1165 = vunpack.c.l.s4 839922192
        %v1166 = vunpack.c.0.s8 %v1165
        %v1167 = vlaneseq
        %v1168 = vshrl.u32 %v1167, 7
        %v1169 = vsub.s32 %v1166, %v1168
        %v1170 = vrot.slane %v1162, %v1169
        %1172 = vset.pattern.permute.xlu0 0
        %1173 = vperm.xlu0 %1172, %v1034
        %v1174 = vpop.permute.xlu0 %1173
        %v1177 = vunpack.c.l.s4 839922192
        %v1178 = vunpack.c.0.s8 %v1177
        %v1179 = vlaneseq
        %v1180 = vshrl.u32 %v1179, 7
        %v1181 = vsub.s32 %v1178, %v1180
        %v1182 = vrot.slane %v1174, %v1181
        %1184 = vset.pattern.permute.xlu0 0
        %1185 = vperm.xlu0 %1184, %v1035
        %v1186 = vpop.permute.xlu0 %1185
        %v1189 = vunpack.c.l.s4 839922192
        %v1190 = vunpack.c.0.s8 %v1189
        %v1191 = vlaneseq
        %v1192 = vshrl.u32 %v1191, 7
        %v1193 = vsub.s32 %v1190, %v1192
        %v1194 = vrot.slane %v1186, %v1193
        %1196 = vset.pattern.permute.xlu0 0
        %1197 = vperm.xlu0 %1196, %v1036
        %v1198 = vpop.permute.xlu0 %1197
        %v1201 = vunpack.c.l.s4 839922192
        %v1202 = vunpack.c.0.s8 %v1201
        %v1203 = vlaneseq
        %v1204 = vshrl.u32 %v1203, 7
        %v1205 = vsub.s32 %v1202, %v1204
        %v1206 = vrot.slane %v1198, %v1205
        %1208 = vset.pattern.permute.xlu0 0
        %1209 = vperm.xlu0 %1208, %v1037
        %v1210 = vpop.permute.xlu0 %1209
        %v1213 = vunpack.c.l.s4 839922192
        %v1214 = vunpack.c.0.s8 %v1213
        %v1215 = vlaneseq
        %v1216 = vshrl.u32 %v1215, 7
        %v1217 = vsub.s32 %v1214, %v1216
        %v1218 = vrot.slane %v1210, %v1217
        %1220 = vset.pattern.permute.xlu0 0
        %1221 = vperm.xlu0 %1220, %v1038
        %v1222 = vpop.permute.xlu0 %1221
        %v1225 = vunpack.c.l.s4 839922192
        %v1226 = vunpack.c.0.s8 %v1225
        %v1227 = vlaneseq
        %v1228 = vshrl.u32 %v1227, 7
        %v1229 = vsub.s32 %v1226, %v1228
        %v1230 = vrot.slane %v1222, %v1229
        %v1247 = vunpack.c.l.b16 %v1050
        %v1248 = vunpack.c.l.b16 %v1062
        %v1249 = vunpack.c.l.b16 %v1074
        %v1250 = vunpack.c.l.b16 %v1086
        %v1251 = vunpack.c.l.b16 %v1098
        %v1252 = vunpack.c.l.b16 %v1110
        %v1253 = vunpack.c.l.b16 %v1122
        %v1254 = vunpack.c.l.b16 %v1134
        %v1255 = vunpack.c.l.b16 %v1146
        %v1256 = vunpack.c.l.b16 %v1158
        %v1257 = vunpack.c.l.b16 %v1170
        %v1258 = vunpack.c.l.b16 %v1182
        %v1259 = vunpack.c.l.b16 %v1194
        %v1260 = vunpack.c.l.b16 %v1206
        %v1261 = vunpack.c.l.b16 %v1218
        %v1262 = vunpack.c.l.b16 %v1230
        %v1263 = vpack.c.b16 %v1248, %v1247
        %v1264 = vpack.c.b16 %v1250, %v1249
        %v1265 = vpack.c.b16 %v1252, %v1251
        %v1266 = vpack.c.b16 %v1254, %v1253
        %v1267 = vpack.c.b16 %v1256, %v1255
        %v1268 = vpack.c.b16 %v1258, %v1257
        %v1269 = vpack.c.b16 %v1260, %v1259
        %v1270 = vpack.c.b16 %v1262, %v1261
        %v1279 = vadd.bf16 %v1015, %v1263
        %v1280 = vadd.bf16 %v1016, %v1264
        %v1281 = vadd.bf16 %v1017, %v1265
        %v1282 = vadd.bf16 %v1018, %v1266
        %v1283 = vadd.bf16 %v1019, %v1267
        %v1284 = vadd.bf16 %v1020, %v1268
        %v1285 = vadd.bf16 %v1021, %v1269
        %v1286 = vadd.bf16 %v1022, %v1270
        %v1287 = vmax.bf16 %v1279, 0
        %v1288 = vmax.bf16 %v1280, 0
        %v1289 = vmax.bf16 %v1281, 0
        %v1290 = vmax.bf16 %v1282, 0
        %v1291 = vmax.bf16 %v1283, 0
        %v1292 = vmax.bf16 %v1284, 0
        %v1293 = vmax.bf16 %v1285, 0
        %v1294 = vmax.bf16 %v1286, 0
        %v1295 = vld [vmem:[%s5] sm:$0x1]
        %s1296 = sld [smem:[#allocation2]]
        %v1297 = vstv %s1296
        %1298 = vmatprep.subr.bf16.mxu0 0
        %1299 = vmatpush1.bf16.msra.mxu0 %v1287
        %1300 = vmatprep.subr.bf16.mxu0 0
        %1301 = vmatpush1.bf16.msra.mxu0 %v1288
        %1302 = vmatprep.subr.bf16.mxu0 0
        %1303 = vmatpush1.bf16.msra.mxu0 %v1289
        %1304 = vmatprep.subr.bf16.mxu0 0
        %1305 = vmatpush1.bf16.msra.mxu0 %v1290
        %1306 = vmatprep.subr.bf16.mxu0 0
        %1307 = vmatpush1.bf16.msra.mxu0 %v1291
        %1308 = vmatprep.subr.bf16.mxu0 0
        %1309 = vmatpush1.bf16.msra.mxu0 %v1292
        %1310 = vmatprep.subr.bf16.mxu0 0
        %1311 = vmatpush1.bf16.msra.mxu0 %v1293
        %1312 = vmatprep.subr.bf16.mxu0 0
        %1313 = vmatpush1.bf16.msra.mxu0 %v1294
        %1314 = vmatprep.subr.bf16.mxu0 0
        %1315 = vmatpush1.bf16.msra.mxu0 0
        %1316 = vmatprep.subr.bf16.mxu0 0
        %1317 = vmatpush1.bf16.msra.mxu0 0
        %1318 = vmatprep.subr.bf16.mxu0 0
        %1319 = vmatpush1.bf16.msra.mxu0 0
        %1320 = vmatprep.subr.bf16.mxu0 0
        %1321 = vmatpush1.bf16.msra.mxu0 0
        %1322 = vmatprep.subr.bf16.mxu0 0
        %1323 = vmatpush1.bf16.msra.mxu0 0
        %1324 = vmatprep.subr.bf16.mxu0 0
        %1325 = vmatpush1.bf16.msra.mxu0 0
        %1326 = vmatprep.subr.bf16.mxu0 0
        %1327 = vmatpush1.bf16.msra.mxu0 0
        %1328 = vmatprep.subr.bf16.mxu0 0
        %1329 = vmatpush1.bf16.msra.mxu0 0
        %1330 = vmatprep.mubr.bf16.mxu0 0
        %1331 = vmatmul.mubr.bf16.gmra.mrb[0].mxu0 %v1295
        %v1332 = vpop.f32.mrb[0].mxu0
        %v1333 = vadd.f32 %v1297, %v1332
        %v1334 = vpop.f32.mrb[0].mxu0
        %v1335 = vpop.f32.mrb[0].mxu0
        %v1336 = vpop.f32.mrb[0].mxu0
        %1337 = vdwg.mxu0
        %1338 = vst [vmem:[%s284] sm:$0x1] %v1333
        %s1339 = sand.u32 %s182, 1
        %s1340 = scalar_lea.sflag [#allocation4], %s1339
        %s1341 = sand.u32 %s182, 1
        %s1342 = scalar_lea.vmem [#allocation3], %s1341
        // Predicated region
        $region49: #{tpu_custom_call.1} parent=47 // pred_check
          %p1343 = pneg %p192
        $region50: #{tpu_custom_call.1} parent=47 // pred_check_branch
          %1345 = sbr.rel (%p1343) target = $region52
        $region51: #{tpu_custom_call.1} parent=47 // pred_region
          %s1347 = ssub.s32 16, 16
          %1348 = vsyncadd %s1340, %s1347
          %s1349 = smul.addr %s22, 16
          %s1350 = scalar_lea.hbm %s7, %s1349
          %s1352 = sshll.u32 %s1342, 4
          %s1353 = int_to_ptr.vmem [resolvable:$true] %s1352
          %1355 = dma.vmem_to_hbm [thread:$0]  %s1353, 16, %s1350, %s1340
        $region52: #{tpu_custom_call.1} parent=47 // pred_fallthru
          _
      $region48: #{tpu_custom_call.1} parent=5 // pred_fallthru
        _
      %p1356 = scmp.le.s32.totalorder 2, %s17
      // Predicated region
      $region53: #{tpu_custom_call.1} parent=5 // pred_check
        %p1357 = pneg %p1356
      $region54: #{tpu_custom_call.1} parent=5 // pred_check_branch
        %1359 = sbr.rel (%p1357) target = $region56
      $region55: #{tpu_custom_call.1} parent=5 // pred_region
        %s1360 = ssub.s32 %s17, 2
        // Predicated region
        $region57: #{tpu_custom_call.1} parent=55 // pred_check
          %p1361 = pneg %p198
        $region58: #{tpu_custom_call.1} parent=55 // pred_check_branch
          %1363 = sbr.rel (%p1361) target = $region60
        $region59: #{tpu_custom_call.1} parent=55 // pred_region
          %s1364 = sand.u32 %s183, 1
          %s1365 = scalar_lea.sflag [#allocation4], %s1364
          %s1366 = sand.u32 %s183, 1
          %s1367 = scalar_lea.vmem [#allocation3], %s1366
          %1368 = dma.done %s1365, 16
        $region60: #{tpu_custom_call.1} parent=55 // pred_fallthru
          _
      $region56: #{tpu_custom_call.1} parent=5 // pred_fallthru
        _
    $region6: #{tpu_custom_call.1} parent=1 // loop_footer
      %s21 = sadd.s32 1, %s17
    $region7: #{tpu_custom_call.1} parent=1 // loop_footer_branch
      %16 = sbr.rel target = $region3
    $region8: #{tpu_custom_call.1} parent=1 // loop_exit
      _
    %1369 = vsyncpa [#allocation4], 1
    %s1370 = scalar_lea.sflag [#allocation4], 1
    %1371 = vsyncpa %s1370, 1

</llo_original>
